<compile_context>
chip_gen: v6e
topology: v6e:2x2x1
jax: 0.10.0
libtpu: 0.0.40
codegen_flags: <defaults>
</compile_context>

<pallas_src>
import functools

import jax
import jax.numpy as jnp
import numpy as np
from jax.experimental import pallas as pl
from jax.experimental.pallas import tpu as pltpu


# --------------------------------------------------------------------------
# pltpu.roll convention probe (guards the im2col shift direction against any
# jnp.roll-vs-rotate sign-convention difference across jax versions)
# --------------------------------------------------------------------------
def _roll_probe_kernel(x_ref, o_ref):
    o_ref[...] = pltpu.roll(x_ref[...], shift=1, axis=1)


_ROLL_SIGN_CACHE = []


def _roll_shift_sign():
    """Return s such that
    pltpu.roll(x, shift=(s*off) % n, axis=-1)[..., p] == x[..., (p+off) % n]."""
    if _ROLL_SIGN_CACHE:
        return _ROLL_SIGN_CACHE[0]
    n = 256
    x = jnp.tile(jnp.arange(n, dtype=jnp.float32)[None, :], (8, 1))
    y = pl.pallas_call(
        _roll_probe_kernel,
        out_shape=jax.ShapeDtypeStruct((8, n), jnp.float32),
    )(x)
    first = int(np.asarray(y[0, 0]))
    if first == n - 1:          # jnp.roll convention: y[p] = x[p - shift]
        sign = -1
    elif first == 1:            # opposite convention: y[p] = x[p + shift]
        sign = 1
    else:
        raise RuntimeError(f"unexpected pltpu.roll semantics (probe={first})")
    _ROLL_SIGN_CACHE.append(sign)
    return sign


# --------------------------------------------------------------------------
# fused FuseNet kernel (one grid step == one batch element)
# --------------------------------------------------------------------------
def fusenet_kernel(
    depth_ref, guide_ref, mask_ref,
    gg_w, gg_b, gd_w, gd_b,                     # fused GateConv2D weights
    sqd_w, sqg_w, sq_b,                         # MMAB squeeze (split halves)
    ex1_w, ex1_b, ex2_w, ex2_b,                 # MMAB excitations (transposed)
    r1_w, r1_b, r2_w, r2_b,                     # ResNet convs
    prelu_ref,                                  # (8,) PReLU slopes in SMEM
    out_ref,
    *, W, roll_sign,
):
    C = depth_ref.shape[1]
    HW = depth_ref.shape[2]

    depth_in = depth_ref[0]            # (C, HW), lane-dense
    guide_in = guide_ref[0]            # (C, HW)
    masks = mask_ref[...]              # (9, HW) boundary masks

    a_gfeat = prelu_ref[0]
    a_dfeat = prelu_ref[1]
    a_sq = prelu_ref[2]
    a_r1 = prelu_ref[3]
    a_out = prelu_ref[4]

    def prelu(x, a):
        return jnp.maximum(x, 0.0) + a * jnp.minimum(x, 0.0)

    def sigmoid(x):
        # exp() goes to the EUP; reciprocal through the Pallas primitive.
        # TODO(synk): flip to approx=True (EUP vrcp) once its error bound is
        # validated against the accuracy budget of the deployed model.
        return pl.reciprocal(1.0 + jnp.exp(-x), approx=False)

    def im2col(x):
        """(C, HW) -> (9C, HW) patch matrix via 8 lane-rolls + boundary masks."""
        parts = []
        tap = 0
        for dh in (-1, 0, 1):
            for dw in (-1, 0, 1):
                off = dh * W + dw
                if off == 0:
                    parts.append(x)                       # centre tap, no mask
                else:
                    shifted = pltpu.roll(
                        x, shift=(roll_sign * off) % HW, axis=1)
                    parts.append(shifted * masks[tap:tap + 1, :])
                tap += 1
        return jnp.concatenate(parts, axis=0)

    def conv(patches, w_ref, b_ref):
        # (Cout, 9Cin) @ (9Cin, HW) + (Cout, 1) — one MXU matmul per conv
        return jnp.dot(w_ref[...], patches,
                       preferred_element_type=jnp.float32) + b_ref[...]

    # ---- GateConv2D on guide / depth (Attention || Feature fused) ----
    g = conv(im2col(guide_in), gg_w, gg_b)                # (2C, HW)
    guide = sigmoid(g[:C]) * prelu(g[C:], a_gfeat)        # (C, HW)

    d = conv(im2col(depth_in), gd_w, gd_b)                # (2C, HW)
    depth = sigmoid(d[:C]) * prelu(d[C:], a_dfeat)        # (C, HW)

    # ---- MMAB: squeeze split over the two halves of cat(depth, guide) ----
    fuse = prelu(
        jnp.dot(sqd_w[...], im2col(depth), preferred_element_type=jnp.float32)
        + jnp.dot(sqg_w[...], im2col(guide), preferred_element_type=jnp.float32)
        + sq_b[...],
        a_sq)                                             # (C2, HW)
    mean = jnp.mean(fuse, axis=1, keepdims=True)          # avg pool   (C2, 1)
    var = jnp.mean((fuse - mean) ** 2, axis=1, keepdims=True)  # variance pool
    stat = mean + var                                     # (C2, 1)

    d_gate = sigmoid(jnp.dot(ex1_w[...], stat,
                             preferred_element_type=jnp.float32) + ex1_b[...])
    g_gate = sigmoid(jnp.dot(ex2_w[...], stat,
                             preferred_element_type=jnp.float32) + ex2_b[...])
    depth = depth * d_gate * 0.5                          # .div(2)
    guide = guide * g_gate * 0.5

    # ---- ResNet ----
    x = depth + guide
    y = prelu(conv(im2col(x), r1_w, r1_b), a_r1)
    y = conv(im2col(y), r2_w, r2_b)                       # second conv: no act
    out_ref[0] = prelu(y + x, a_out)                      # lane-dense full vst


# --------------------------------------------------------------------------
# wrapper
# --------------------------------------------------------------------------
def fusenet_forward(depth, guide, params):
    """depth, guide: (B, C, H, W) float32 (PyTorch NCHW). Returns (B, C, H, W)."""
    B, C, H, W = depth.shape
    HW = H * W
    p = params

    def prep_w(w):            # HWIO (3,3,Cin,Cout) -> (Cout, 9*Cin), tap-major
        cout, cin = w.shape[3], w.shape[2]
        return jnp.transpose(w, (3, 0, 1, 2)).reshape(cout, 9 * cin)

    def prep_b(b):            # (Cout,) -> (Cout, 1)  broadcast over lanes
        return b.reshape(-1, 1)

    # fuse Attention || Feature weights (one matmul per GateConv2D)
    gg_w = prep_w(jnp.concatenate([p["g_att_w"], p["g_feat_w"]], axis=3))
    gg_b = prep_b(jnp.concatenate([p["g_att_b"], p["g_feat_b"]], axis=0))
    gd_w = prep_w(jnp.concatenate([p["d_att_w"], p["d_feat_w"]], axis=3))
    gd_b = prep_b(jnp.concatenate([p["d_att_b"], p["d_feat_b"]], axis=0))
    # split squeeze over the concat halves: depth channels first, then guide
    sqd_w = prep_w(p["sq_w"][:, :, :C, :])
    sqg_w = prep_w(p["sq_w"][:, :, C:, :])
    sq_b = prep_b(p["sq_b"])
    ex1_wT = jnp.transpose(p["ex1_w"])          # (C, C2)
    ex2_wT = jnp.transpose(p["ex2_w"])
    ex1_b = prep_b(p["ex1_b"])
    ex2_b = prep_b(p["ex2_b"])
    r1_w, r1_b = prep_w(p["r1_w"]), prep_b(p["r1_b"])
    r2_w, r2_b = prep_w(p["r2_w"]), prep_b(p["r2_b"])
    prelu = p["prelu"].astype(jnp.float32)      # (8,) scalar slopes -> SMEM

    # 3x3 boundary masks (replace zero-padding), defined at output pixels
    rows = np.arange(H)[:, None]
    cols = np.arange(W)[None, :]
    mask_list = []
    for dh in (-1, 0, 1):
        for dw in (-1, 0, 1):
            m = ((rows + dh >= 0) & (rows + dh < H) &
                 (cols + dw >= 0) & (cols + dw < W))
            mask_list.append(m.astype(np.float32).reshape(-1))
    masks = jnp.asarray(np.stack(mask_list, axis=0))      # (9, HW)

    depth_f = depth.reshape(B, C, HW)           # free reshape -> lane-dense
    guide_f = guide.reshape(B, C, HW)

    weights = [gg_w, gg_b, gd_w, gd_b, sqd_w, sqg_w, sq_b,
               ex1_wT, ex1_b, ex2_wT, ex2_b, r1_w, r1_b, r2_w, r2_b]

    img_spec = pl.BlockSpec((1, C, HW), lambda b: (b, 0, 0))

    def full_spec(arr):
        nd = arr.ndim
        return pl.BlockSpec(arr.shape, lambda b, _n=nd: (0,) * _n)

    in_specs = ([img_spec, img_spec, full_spec(masks)]
                + [full_spec(w) for w in weights]
                + [pl.BlockSpec(memory_space=pltpu.MemorySpace.SMEM)])

    kernel = functools.partial(fusenet_kernel, W=W,
                               roll_sign=_roll_shift_sign())

    # TODO(synk): for real SR image sizes add spatial halo tiling
    # (overlapping BlockSpec / manual DMA) + explicit vmem_limit_bytes; at
    # 16x16 the whole image fits comfortably in VMEM.
    out = pl.pallas_call(
        kernel,
        out_shape=jax.ShapeDtypeStruct((B, C, HW), jnp.float32),
        grid=(B,),
        in_specs=in_specs,
        out_specs=pl.BlockSpec((1, C, HW), lambda b: (b, 0, 0)),
        compiler_params=pltpu.CompilerParams(
            dimension_semantics=("parallel",)),
    )(depth_f, guide_f, masks, *weights, prelu)

    return out.reshape(B, C, H, W)


# --------------------------------------------------------------------------
# pure-JAX reference (for verification), NCHW
# --------------------------------------------------------------------------
def _conv3x3_ref(x, w, b):
    y = jax.lax.conv_general_dilated(
        x, w, window_strides=(1, 1), padding="SAME",
        dimension_numbers=("NCHW", "HWIO", "NCHW"))
    return y + b.reshape(1, -1, 1, 1)


def _prelu_ref(x, a):
    return jnp.maximum(x, 0.0) + a * jnp.minimum(x, 0.0)


def fusenet_ref(depth, guide, p):
    pr = np.asarray(p["prelu"])
    a_gfeat, a_dfeat, a_sq, a_r1, a_out = pr[0], pr[1], pr[2], pr[3], pr[4]

    guide = jax.nn.sigmoid(_conv3x3_ref(guide, p["g_att_w"], p["g_att_b"])) * \
        _prelu_ref(_conv3x3_ref(guide, p["g_feat_w"], p["g_feat_b"]), a_gfeat)
    depth = jax.nn.sigmoid(_conv3x3_ref(depth, p["d_att_w"], p["d_att_b"])) * \
        _prelu_ref(_conv3x3_ref(depth, p["d_feat_w"], p["d_feat_b"]), a_dfeat)

    cat = jnp.concatenate([depth, guide], axis=1)
    fuse = _prelu_ref(_conv3x3_ref(cat, p["sq_w"], p["sq_b"]), a_sq)
    mean = fuse.mean(axis=(2, 3), keepdims=True)
    var = ((fuse - mean) ** 2).mean(axis=(2, 3), keepdims=True)
    stat = (mean + var)[:, :, 0, 0]                           # (B, C2)
    d_gate = jax.nn.sigmoid(stat @ p["ex1_w"] + p["ex1_b"])
    g_gate = jax.nn.sigmoid(stat @ p["ex2_w"] + p["ex2_b"])
    depth = depth * d_gate[:, :, None, None] / 2.0
    guide = guide * g_gate[:, :, None, None] / 2.0

    x = depth + guide
    y = _prelu_ref(_conv3x3_ref(x, p["r1_w"], p["r1_b"]), a_r1)
    y = _conv3x3_ref(y, p["r2_w"], p["r2_b"])
    return _prelu_ref(y + x, a_out)


# --------------------------------------------------------------------------
# deterministic parameter init
# --------------------------------------------------------------------------
def init_params(key, num_features, reduction_ratio=4):
    C = num_features
    C2 = (2 * C) // reduction_ratio
    keys = iter(jax.random.split(key, 32))

    def rnd(shape, scale=0.1):
        return jax.random.normal(next(keys), shape, jnp.float32) * scale

    return {
        "g_att_w": rnd((3, 3, C, C)),   "g_att_b": rnd((C,), 0.05),
        "g_feat_w": rnd((3, 3, C, C)),  "g_feat_b": rnd((C,), 0.05),
        "d_att_w": rnd((3, 3, C, C)),   "d_att_b": rnd((C,), 0.05),
        "d_feat_w": rnd((3, 3, C, C)),  "d_feat_b": rnd((C,), 0.05),
        "sq_w": rnd((3, 3, 2 * C, C2)), "sq_b": rnd((C2,), 0.05),
        "ex1_w": rnd((C2, C)),          "ex1_b": rnd((C,), 0.05),
        "ex2_w": rnd((C2, C)),          "ex2_b": rnd((C,), 0.05),
        "r1_w": rnd((3, 3, C, C)),      "r1_b": rnd((C,), 0.05),
        "r2_w": rnd((3, 3, C, C)),      "r2_b": rnd((C,), 0.05),
        # PReLU slopes: [gate_feat(guide), gate_feat(depth), mmab_squeeze,
        #                resnet_layer1, resnet_outer, pad, pad, pad]
        "prelu": jnp.array([0.25, 0.20, 0.30, 0.15, 0.10, 0.0, 0.0, 0.0],
                           jnp.float32),
    }


# --------------------------------------------------------------------------
if __name__ == "__main__":
    B, C, H, W = 2, 8, 16, 16          # PyTorch layout: depth/guide [2, 8, 16, 16]
    reduction_ratio = 4

    key = jax.random.PRNGKey(0)
    k_d, k_g, k_p = jax.random.split(key, 3)
    depth = jax.random.normal(k_d, (B, C, H, W), jnp.float32)
    guide = jax.random.normal(k_g, (B, C, H, W), jnp.float32)
    params = init_params(k_p, C, reduction_ratio)

    out = jax.block_until_ready(fusenet_forward(depth, guide, params))
    ref = jax.block_until_ready(fusenet_ref(depth, guide, params))

    assert out.shape == (B, C, H, W), out.shape
    assert not bool(jnp.any(jnp.isnan(out))), "NaNs in kernel output"
    np.testing.assert_allclose(np.asarray(out), np.asarray(ref),
                               rtol=2e-3, atol=2e-3)
    print("KERNEL_OK")
</pallas_src>

<mosaic_0001>
module attributes {stable_mosaic.version = 11 : i64} {
  func.func @_roll_probe_kernel(%arg0: memref<8x256xf32, #tpu.memory_space<vmem>>, %arg1: memref<8x256xf32, #tpu.memory_space<vmem>>) attributes {dimension_semantics = [], scalar_prefetch = 0 : i64, scratch_operands = 0 : i64, tpu.core_type = #tpu.core_type<tc>} {
    %c0 = arith.constant 0 : index
    %c0_0 = arith.constant 0 : index
    %0 = vector.load %arg0[%c0, %c0_0] : memref<8x256xf32, #tpu.memory_space<vmem>>, vector<8x256xf32>
    %c1_i32 = arith.constant 1 : i32
    %1 = tpu.dynamic_rotate %0 by %c1_i32 dim 1 : vector<8x256xf32>, i32 -> vector<8x256xf32>
    %c0_1 = arith.constant 0 : index
    %c0_2 = arith.constant 0 : index
    %2 = vector.load %arg1[%c0_1, %c0_2] : memref<8x256xf32, #tpu.memory_space<vmem>>, vector<8x256xf32>
    tpu.vector_store %arg1[%c0_1, %c0_2], %1 {strides = array<i32>} : memref<8x256xf32, #tpu.memory_space<vmem>>, vector<8x256xf32>,
    return
  }
}

</mosaic_0001>

<llo_original>
// kernel: tpu_custom_call.1
$region0: #{tpu_custom_call.1}
  #allocation0 [shape = 'u32[]', space=smem, size = 0x4, offset = 0x4, fixed_abs, tag = 'smem constant byte address 0x4 - core index']
  #allocation1 [shape = 'u32[144,128]{1,0:T(1,128)}', space=vmem, size = 0x12000, scoped, tag = 'internal scratch']
  %s0 = inlined_call_operand.hbm [shape: f32[8,256], index: 0, kind: input, shape index: {}]
  %s1 = inlined_call_operand.hbm [shape: f32[8,256], index: 1, kind: output, shape index: {}]
  %s2 = sld [smem:[#allocation0]]
  $region18: #{tpu_custom_call.1} parent=0
    _
  %s4 = ssub.s32 1, %s2
  %s5 = scalar_select 0, %s4, %s2
  $region1: #{tpu_custom_call.1} parent=0
    #allocation2 [shape = 'u8[8192]{0}', space=vmem, size = 0x2000, scoped, tag = 'input window, operand 0, single buffered']
    #allocation3 [shape = 's32[1]{0}', space=sflag, size = 0x4, scoped, tag = 'scoped memory for tpu_custom_call.1']
    #allocation4 [shape = 's32[1]{0}', space=sflag, size = 0x4, scoped, tag = 'scoped memory for tpu_custom_call.1']
    #allocation5 [shape = 'u8[8192]{0}', space=vmem, size = 0x2000, scoped, tag = 'output window, operand 0, single buffered']
    %6 = vsyncpa [#allocation3], 0
    %7 = vsyncpa [#allocation4], 0
    // Predicated region
    $region2: #{tpu_custom_call.1} parent=1 // pred_check
      _
    $region3: #{tpu_custom_call.1} parent=1 // pred_check_branch
      %9 = sbr.rel (0) target = $region5
    $region4: #{tpu_custom_call.1} parent=1 // pred_region
      %s11 = ssub.s32 256, 256
      %12 = vsyncadd [#allocation3], %s11
      %s14 = sshll.u32 [#allocation2], 4
      %s15 = int_to_ptr.vmem [resolvable:$true] %s14
      %17 = dma.hbm_to_vmem [thread:$0]  %s0, 256, %s15, [#allocation3]
    $region5: #{tpu_custom_call.1} parent=1 // pred_fallthru
      _
    // Predicated region
    $region6: #{tpu_custom_call.1} parent=1 // pred_check
      _
    $region7: #{tpu_custom_call.1} parent=1 // pred_check_branch
      %19 = sbr.rel (0) target = $region9
    $region8: #{tpu_custom_call.1} parent=1 // pred_region
      %20 = dma.done [#allocation3], 256
    $region9: #{tpu_custom_call.1} parent=1 // pred_fallthru
      _
    %v21 = vld [vmem:[#allocation2] sm:$0xff]
    %v22 = vld [vmem:[#allocation2 + $0x8] sm:$0xff]
    %23 = vrot.lane.b32.xlu0 %v21, 1
    %v24 = vpop.permute.xlu0 %23
    %25 = vrot.lane.b32.xlu0 %v22, 1
    %v26 = vpop.permute.xlu0 %25
    %v27 = vlaneseq
    %v28 = vand.u32 %v27, 127
    %vm29 = vcmp.lt.s32.totalorder %v28, 1
    %v30 = vsel %vm29, %v24, %v26
    %v31 = vsel %vm29, %v26, %v24
    %32 = vst [vmem:[#allocation5] sm:$0xff] %v31
    %33 = vst [vmem:[#allocation5 + $0x8] sm:$0xff] %v30
    // Predicated region
    $region10: #{tpu_custom_call.1} parent=1 // pred_check
      _
    $region11: #{tpu_custom_call.1} parent=1 // pred_check_branch
      %35 = sbr.rel (0) target = $region13
    $region12: #{tpu_custom_call.1} parent=1 // pred_region
      %s37 = ssub.s32 256, 256
      %38 = vsyncadd [#allocation4], %s37
      %s40 = sshll.u32 [#allocation5], 4
      %s41 = int_to_ptr.vmem [resolvable:$true] %s40
      %43 = dma.vmem_to_hbm [thread:$0]  %s41, 256, %s1, [#allocation4]
    $region13: #{tpu_custom_call.1} parent=1 // pred_fallthru
      _
    // Predicated region
    $region14: #{tpu_custom_call.1} parent=1 // pred_check
      _
    $region15: #{tpu_custom_call.1} parent=1 // pred_check_branch
      %45 = sbr.rel (0) target = $region17
    $region16: #{tpu_custom_call.1} parent=1 // pred_region
      %46 = dma.done [#allocation4], 256
    $region17: #{tpu_custom_call.1} parent=1 // pred_fallthru
      _
    %47 = vsyncpa [#allocation3], 1
    %48 = vsyncpa [#allocation4], 1

</llo_original>
